<compile_context>
chip_gen: v7x
topology: tpu7x:2x2x1
jax: 0.10.0
libtpu: 0.0.40
codegen_flags: <defaults>
</compile_context>

<pallas_src>
import functools

import jax
import jax.numpy as jnp
from jax.experimental import pallas as pl
from jax.experimental.pallas import tpu as pltpu

HIDDEN = 256          # hidden width of the DQN MLP
LANE = 128            # TPU lane width
SUBLANE_F32 = 8       # f32 sublane granularity (x enters the kernel as f32)
SUBLANE_BF16 = 16     # bf16 sublane packing (weight-slab row alignment)
TB_MAX = 1024         # max batch-tile rows (swept 256/512/1024/2048; 1024 balances
                      # per-step pipeline overhead vs. vld/vst pressure)
SPLIT_MIN_B = 256     # above this batch, use >=2 tiles so v7x's 2nd TC gets work


def _round_up(x, m):
    return (x + m - 1) // m * m


def _dqn_kernel(x_ref, w_ref, b_ref, o_ref, *, n_obs, k_slab, n_pad):
    """Fused 3-layer MLP on one batch tile.

    x_ref: (TB, n_obs)           f32    raw activations (cast to bf16 in-kernel)
    w_ref: (k_slab+2*256, 256)   bf16   [W1(pad rows) ; W2 ; W3(cols 0:n_pad)]
    b_ref: (8, 256)              f32    row0=b1, row1=b2, row2[:n_pad]=b3
    o_ref: (TB, n_pad)           f32/bf16 (lane-dense, unmasked store)
    """
    # f32 -> bf16 cast on the VPU; removes the separate pad/cast fusion from the
    # wrapper hot path.
    x = x_ref[...].astype(jnp.bfloat16)                      # (TB, n_obs)

    # Static, tile-aligned views into the packed parameter slabs (zero cost).
    w1 = w_ref[0:n_obs, :]                                   # (n_obs, 256)
    w2 = w_ref[k_slab:k_slab + HIDDEN, :]                    # (256, 256)
    w3 = w_ref[k_slab + HIDDEN:k_slab + 2 * HIDDEN, 0:n_pad] # (256, n_pad)
    b1 = b_ref[0:1, :]                                       # (1, 256) f32
    b2 = b_ref[1:2, :]                                       # (1, 256) f32
    b3 = b_ref[2:3, 0:n_pad]                                 # (1, n_pad) f32

    # Layer 1: relu(x @ W1 + b1)   (bf16 MXU inputs, f32 accumulation)
    h1 = jnp.dot(x, w1, preferred_element_type=jnp.float32) + b1
    h1 = jnp.maximum(h1, 0.0).astype(jnp.bfloat16)
    # Layer 2: relu(h1 @ W2 + b2)
    h2 = jnp.dot(h1, w2, preferred_element_type=jnp.float32) + b2
    h2 = jnp.maximum(h2, 0.0).astype(jnp.bfloat16)
    # Layer 3: h2 @ W3 + b3   (lane-dense, unmasked store)
    h3 = jnp.dot(h2, w3, preferred_element_type=jnp.float32) + b3
    o_ref[...] = h3.astype(o_ref.dtype)


def pack_dqn_params(params, n_actions):
    """Pack the 6 parameter tensors into one bf16 weight slab + one f32 bias slab.

    Done once (outside the hot path) so the kernel sees only 2 parameter DMAs.
    """
    n_obs = params["w1"].shape[0]
    # W1 rows padded only to the bf16 sublane tile (16), not to 128 — keeps the
    # per-call weight DMA as small as possible.
    k_slab = _round_up(max(n_obs, 1), SUBLANE_BF16)
    n_pad = _round_up(max(n_actions, 1), LANE)
    if n_pad > HIDDEN:
        raise ValueError("n_actions > 256 not supported by this packing layout")

    bf = jnp.bfloat16
    w1 = jnp.zeros((k_slab, HIDDEN), bf).at[:n_obs, :].set(params["w1"].astype(bf))
    w2 = params["w2"].astype(bf)
    # W3: pad the action (column) dim into a full 256-wide row block; only
    # columns [0:n_pad) are read by the kernel.
    w3 = jnp.zeros((HIDDEN, HIDDEN), bf).at[:, :n_actions].set(params["w3"].astype(bf))
    w_packed = jnp.concatenate([w1, w2, w3], axis=0)         # (k_slab+512, 256) bf16

    b_packed = jnp.zeros((8, HIDDEN), jnp.float32)
    b_packed = b_packed.at[0, :].set(params["b1"].reshape(-1))
    b_packed = b_packed.at[1, :].set(params["b2"].reshape(-1))
    b_packed = b_packed.at[2, :n_actions].set(params["b3"].reshape(-1))
    return w_packed, b_packed


@functools.partial(jax.jit, static_argnames=("n_actions", "out_dtype"))
def dqn_forward(x, w_packed, b_packed, n_actions, out_dtype=jnp.float32):
    """Fused DQN forward pass.

    x:        [B, n_observations]  float32
    w_packed: [k_slab + 512, 256]  bfloat16 (from pack_dqn_params)
    b_packed: [8, 256]             float32  (from pack_dqn_params)
    returns:  [B, n_actions]       out_dtype (default f32; use bf16 on v5e to
                                   halve the dominant output store stream)
    """
    B, n_obs = x.shape
    k_slab = w_packed.shape[0] - 2 * HIDDEN
    assert n_obs <= k_slab, "x feature dim does not match packed weights"
    n_pad = _round_up(max(n_actions, 1), LANE)

    # --- Batch tiling: balanced tiles, capped at TB_MAX; force >=2 tiles once the
    # batch is big enough so the 'parallel' axis can shard across v7x's two TCs.
    n_tiles = pl.cdiv(B, TB_MAX)
    if B >= SPLIT_MIN_B:
        n_tiles = max(n_tiles, 2)
    if n_tiles == 1:
        tb = B                                  # full-dim block: no batch pad at all
    else:
        tb = _round_up(pl.cdiv(B, n_tiles), SUBLANE_F32)
    grid_b = pl.cdiv(B, tb)
    b_pad = grid_b * tb

    # Only pad the batch when the tile doesn't divide B; allow_input_fusion lets
    # XLA fuse this pad into the pallas_call operand (no standalone dispatch).
    xp = x if b_pad == B else jnp.pad(x, ((0, b_pad - B), (0, 0)))

    kernel = functools.partial(_dqn_kernel, n_obs=n_obs, k_slab=k_slab, n_pad=n_pad)

    out_itemsize = jnp.dtype(out_dtype).itemsize
    flops = 2 * B * (n_obs * HIDDEN + HIDDEN * HIDDEN + HIDDEN * n_actions)
    bytes_accessed = (B * n_obs * 4 + w_packed.size * 2 + b_packed.size * 4
                      + b_pad * n_pad * out_itemsize)

    out = pl.pallas_call(
        kernel,
        out_shape=jax.ShapeDtypeStruct((b_pad, n_pad), out_dtype),
        grid=(grid_b,),
        in_specs=[
            # x: tiled over the batch grid; natural feature width (full-dim block).
            pl.BlockSpec((tb, n_obs), lambda i: (i, 0)),
            # Packed weights / biases: constant block index -> resident across all
            # batch tiles; single-buffered since they are never re-fetched.
            pl.BlockSpec(w_packed.shape, lambda i: (0, 0),
                         pipeline_mode=pl.Buffered(1)),
            pl.BlockSpec(b_packed.shape, lambda i: (0, 0),
                         pipeline_mode=pl.Buffered(1)),
        ],
        out_specs=pl.BlockSpec((tb, n_pad), lambda i: (i, 0)),
        compiler_params=pltpu.CompilerParams(
            dimension_semantics=("parallel",),          # batch across TCs on v7x
            allow_input_fusion=[True, False, False],    # fuse x pad into operand
        ),
        cost_estimate=pl.CostEstimate(
            flops=flops, transcendentals=0, bytes_accessed=bytes_accessed),
    )(xp, w_packed, b_packed)

    return out[:B, :n_actions]


def init_dqn_params(key, n_observations, n_actions):
    """PyTorch-style init: U(-1/sqrt(fan_in), 1/sqrt(fan_in)); weights stored [in, out]."""
    ks = jax.random.split(key, 6)

    def linear(kw, kb, fan_in, fan_out):
        bound = 1.0 / jnp.sqrt(jnp.float32(fan_in))
        w = jax.random.uniform(kw, (fan_in, fan_out), jnp.float32, -bound, bound)
        b = jax.random.uniform(kb, (1, fan_out), jnp.float32, -bound, bound)
        return w, b

    w1, b1 = linear(ks[0], ks[1], n_observations, HIDDEN)
    w2, b2 = linear(ks[2], ks[3], HIDDEN, HIDDEN)
    w3, b3 = linear(ks[4], ks[5], HIDDEN, n_actions)
    return {"w1": w1, "b1": b1, "w2": w2, "b2": b2, "w3": w3, "b3": b3}


def dqn_reference_f32(x, p):
    """Pure-JAX f32 reference (matches the PyTorch module semantics)."""
    h = jnp.maximum(x @ p["w1"] + p["b1"], 0.0)
    h = jnp.maximum(h @ p["w2"] + p["b2"], 0.0)
    return h @ p["w3"] + p["b3"]


def dqn_reference_bf16(x, p):
    """Pure-JAX reference with the same bf16-input / f32-accum precision as the kernel."""
    bf = jnp.bfloat16
    h = jnp.dot(x.astype(bf), p["w1"].astype(bf),
                preferred_element_type=jnp.float32) + p["b1"]
    h = jnp.maximum(h, 0.0)
    h = jnp.dot(h.astype(bf), p["w2"].astype(bf),
                preferred_element_type=jnp.float32) + p["b2"]
    h = jnp.maximum(h, 0.0)
    return jnp.dot(h.astype(bf), p["w3"].astype(bf),
                   preferred_element_type=jnp.float32) + p["b3"]


if __name__ == "__main__":
    key = jax.random.PRNGKey(0)
    k_param, k_x = jax.random.split(key)

    n_observations = 16   # small state vector
    n_actions = 8         # small discrete action space
    batch = 8

    params = init_dqn_params(k_param, n_observations, n_actions)
    x = jax.random.normal(k_x, (batch, n_observations), jnp.float32)

    # Pack parameters once; reuse for every forward call.
    w_packed, b_packed = pack_dqn_params(params, n_actions)

    # Small-batch (single tile, no padding) path.
    out = dqn_forward(x, w_packed, b_packed, n_actions)
    out = jax.block_until_ready(out)
    assert out.shape == (batch, n_actions)

    ref_bf16 = dqn_reference_bf16(x, params)
    ref_f32 = dqn_reference_f32(x, params)
    assert jnp.allclose(out, ref_bf16, atol=1e-2, rtol=1e-2), "mismatch vs bf16 reference"
    assert jnp.allclose(out, ref_f32, atol=1e-1, rtol=1e-1), "mismatch vs f32 reference"

    # Multi-tile path: balanced tiles (B=300 -> two 152-row tiles, grid=2 for v7x
    # dual-TC sharding) with fused batch padding.
    x_big = jax.random.normal(k_x, (300, n_observations), jnp.float32)
    out_big = jax.block_until_ready(dqn_forward(x_big, w_packed, b_packed, n_actions))
    ref_big = dqn_reference_bf16(x_big, params)
    assert out_big.shape == (300, n_actions)
    assert jnp.allclose(out_big, ref_big, atol=1e-2, rtol=1e-2), "mismatch on multi-tile path"

    print("KERNEL_OK")
</pallas_src>

<mosaic_0001>
module attributes {stable_mosaic.version = 11 : i64} {
  func.func @_dqn_kernel(%arg0: i32, %arg1: memref<8x16xf32, #tpu.memory_space<vmem>>, %arg2: memref<528x256xbf16, #tpu.memory_space<vmem>>, %arg3: memref<8x256xf32, #tpu.memory_space<vmem>>, %arg4: memref<8x128xf32, #tpu.memory_space<vmem>>) attributes {dimension_semantics = [#tpu.dimension_semantics<parallel>], iteration_bounds = array<i64: 1>, scalar_prefetch = 0 : i64, scratch_operands = 0 : i64, tpu.core_type = #tpu.core_type<tc>, window_params = [{transform_indices = @transform_0, window_bounds = array<i64: 8, 16>}, {pipeline_mode = #tpu.pipeline_mode<synchronous>, transform_indices = @transform_1, window_bounds = array<i64: 528, 256>}, {pipeline_mode = #tpu.pipeline_mode<synchronous>, transform_indices = @transform_2, window_bounds = array<i64: 8, 256>}, {transform_indices = @transform_3, window_bounds = array<i64: 8, 128>}]} {
    %c0 = arith.constant 0 : index
    %c0_0 = arith.constant 0 : index
    %0 = vector.load %arg1[%c0, %c0_0] : memref<8x16xf32, #tpu.memory_space<vmem>>, vector<8x16xf32>
    %1 = arith.truncf %0 : vector<8x16xf32> to vector<8x16xbf16>
    %c0_1 = arith.constant 0 : index
    %c0_2 = arith.constant 0 : index
    %2 = vector.load %arg2[%c0_1, %c0_2] : memref<528x256xbf16, #tpu.memory_space<vmem>>, vector<16x256xbf16>
    %c16 = arith.constant 16 : index
    %c0_3 = arith.constant 0 : index
    %3 = vector.load %arg2[%c16, %c0_3] : memref<528x256xbf16, #tpu.memory_space<vmem>>, vector<256x256xbf16>
    %c272 = arith.constant 272 : index
    %c0_4 = arith.constant 0 : index
    %4 = vector.load %arg2[%c272, %c0_4] : memref<528x256xbf16, #tpu.memory_space<vmem>>, vector<256x128xbf16>
    %c0_5 = arith.constant 0 : index
    %c0_6 = arith.constant 0 : index
    %5 = vector.load %arg3[%c0_5, %c0_6] : memref<8x256xf32, #tpu.memory_space<vmem>>, vector<1x256xf32>
    %c1 = arith.constant 1 : index
    %c0_7 = arith.constant 0 : index
    %6 = vector.load %arg3[%c1, %c0_7] : memref<8x256xf32, #tpu.memory_space<vmem>>, vector<1x256xf32>
    %c2 = arith.constant 2 : index
    %c0_8 = arith.constant 0 : index
    %7 = vector.load %arg3[%c2, %c0_8] : memref<8x256xf32, #tpu.memory_space<vmem>>, vector<1x128xf32>
    %cst = arith.constant dense<0.000000e+00> : vector<8x256xf32>
    %8 = tpu.matmul %1, %2, %cst {dimension_numbers = #tpu.dot_dimension_numbers<[1], [0], [0], [1], [0, 0, 1, 1], [], []>} : vector<8x16xbf16>, vector<16x256xbf16>, vector<8x256xf32> -> vector<8x256xf32>
    %9 = vector.broadcast %5 : vector<1x256xf32> to vector<8x256xf32>
    %10 = arith.addf %8, %9 : vector<8x256xf32>
    %cst_9 = arith.constant 0.000000e+00 : f32
    %11 = vector.broadcast %cst_9 : f32 to vector<8x256xf32>
    %12 = arith.maximumf %10, %11 : vector<8x256xf32>
    %13 = arith.truncf %12 : vector<8x256xf32> to vector<8x256xbf16>
    %cst_10 = arith.constant dense<0.000000e+00> : vector<8x256xf32>
    %14 = tpu.matmul %13, %3, %cst_10 {dimension_numbers = #tpu.dot_dimension_numbers<[1], [0], [0], [1], [0, 0, 1, 1], [], []>} : vector<8x256xbf16>, vector<256x256xbf16>, vector<8x256xf32> -> vector<8x256xf32>
    %15 = vector.broadcast %6 : vector<1x256xf32> to vector<8x256xf32>
    %16 = arith.addf %14, %15 : vector<8x256xf32>
    %cst_11 = arith.constant 0.000000e+00 : f32
    %17 = vector.broadcast %cst_11 : f32 to vector<8x256xf32>
    %18 = arith.maximumf %16, %17 : vector<8x256xf32>
    %19 = arith.truncf %18 : vector<8x256xf32> to vector<8x256xbf16>
    %cst_12 = arith.constant dense<0.000000e+00> : vector<8x128xf32>
    %20 = tpu.matmul %19, %4, %cst_12 {dimension_numbers = #tpu.dot_dimension_numbers<[1], [0], [0], [1], [0, 0, 1, 1], [], []>} : vector<8x256xbf16>, vector<256x128xbf16>, vector<8x128xf32> -> vector<8x128xf32>
    %21 = vector.broadcast %7 : vector<1x128xf32> to vector<8x128xf32>
    %22 = arith.addf %20, %21 : vector<8x128xf32>
    %c0_13 = arith.constant 0 : index
    %c0_14 = arith.constant 0 : index
    %23 = vector.load %arg4[%c0_13, %c0_14] : memref<8x128xf32, #tpu.memory_space<vmem>>, vector<8x128xf32>
    tpu.vector_store %arg4[%c0_13, %c0_14], %22 {strides = array<i32>} : memref<8x128xf32, #tpu.memory_space<vmem>>, vector<8x128xf32>,
    return
  }
  func.func @transform_0(%arg0: i32) -> (i32, i32) {
    %c0_i32 = arith.constant 0 : i32
    %c0_i32_0 = arith.constant 0 : i32
    return %arg0, %c0_i32 : i32, i32
  }
  func.func @transform_1(%arg0: i32) -> (i32, i32) {
    %c0_i32 = arith.constant 0 : i32
    %c0_i32_0 = arith.constant 0 : i32
    %c0_i32_1 = arith.constant 0 : i32
    return %c0_i32, %c0_i32_0 : i32, i32
  }
  func.func @transform_2(%arg0: i32) -> (i32, i32) {
    %c0_i32 = arith.constant 0 : i32
    %c0_i32_0 = arith.constant 0 : i32
    %c0_i32_1 = arith.constant 0 : i32
    return %c0_i32, %c0_i32_0 : i32, i32
  }
  func.func @transform_3(%arg0: i32) -> (i32, i32) {
    %c0_i32 = arith.constant 0 : i32
    %c0_i32_0 = arith.constant 0 : i32
    return %arg0, %c0_i32 : i32, i32
  }
}

</mosaic_0001>

<llo_original>
// kernel: dqn_forward.1
$region0: #{dqn_forward.1}
  #allocation0 [shape = 'u32[]', space=smem, size = 0x4, offset = 0x4, fixed_abs, tag = 'smem constant byte address 0x4 - core index']
  #allocation1 [shape = 'u32[144,128]{1,0:T(1,128)}', space=vmem, size = 0x12000, scoped, tag = 'internal scratch']
  %s0 = inlined_call_operand.hbm [shape: f32[8,16], index: 0, kind: input, shape index: {}]
  %s1 = inlined_call_operand.hbm [shape: bf16[528,256], index: 1, kind: input, shape index: {}]
  %s2 = inlined_call_operand.hbm [shape: f32[8,256], index: 2, kind: input, shape index: {}]
  %s3 = inlined_call_operand.hbm [shape: f32[8,128], index: 3, kind: output, shape index: {}]
  %s4 = sld [smem:[#allocation0]]
  $region34: #{dqn_forward.1} parent=0
    _
  %s6 = ssub.s32 1, %s4
  %s7 = scalar_select 0, %s6, %s4
  $region1: #{dqn_forward.1} parent=0
    #allocation2 [shape = 'u8[4096]{0}', space=vmem, size = 0x1000, scoped, tag = 'input window, operand 0, single buffered']
    #allocation3 [shape = 's32[1]{0}', space=sflag, size = 0x4, scoped, tag = 'scoped memory for dqn_forward.1']
    #allocation4 [shape = 's32[1]{0}', space=sflag, size = 0x4, scoped, tag = 'scoped memory for dqn_forward.1']
    #allocation5 [shape = 'u8[270336]{0}', space=vmem, size = 0x42000, scoped, tag = 'input window, operand 1, single buffered']
    #allocation6 [shape = 's32[1]{0}', space=sflag, size = 0x4, scoped, tag = 'scoped memory for dqn_forward.1']
    #allocation7 [shape = 'u8[8192]{0}', space=vmem, size = 0x2000, scoped, tag = 'input window, operand 2, single buffered']
    #allocation8 [shape = 'u8[4096]{0}', space=vmem, size = 0x1000, scoped, tag = 'output window, operand 0, single buffered']
    %8 = vsyncpa [#allocation3], 0
    %9 = vsyncpa [#allocation6], 0
    %10 = vsyncpa [#allocation4], 0
    // Predicated region
    $region2: #{dqn_forward.1} parent=1 // pred_check
      _
    $region3: #{dqn_forward.1} parent=1 // pred_check_branch
      %12 = sbr.rel (0) target = $region5
    $region4: #{dqn_forward.1} parent=1 // pred_region
      %s14 = ssub.s32 128, 128
      %15 = vsyncadd [#allocation3], %s14
      %s17 = sshll.u32 [#allocation2], 4
      %s18 = int_to_ptr.vmem [resolvable:$true] %s17
      %20 = dma.hbm_to_vmem [thread:$0]  %s0, 128, %s18, [#allocation3]
    $region5: #{dqn_forward.1} parent=1 // pred_fallthru
      _
    // Predicated region
    $region6: #{dqn_forward.1} parent=1 // pred_check
      _
    $region7: #{dqn_forward.1} parent=1 // pred_check_branch
      %22 = sbr.rel (0) target = $region9
    $region8: #{dqn_forward.1} parent=1 // pred_region
      %s24 = ssub.s32 8448, 8448
      %25 = vsyncadd [#allocation6], %s24
      %s26 = sshll.u32 [#allocation5], 4
      %s27 = int_to_ptr.vmem [resolvable:$true] %s26
      %32 = dma.hbm_to_vmem [thread:$0]  %s1, 8448, %s27, [#allocation6], 128, 128, 8
    $region9: #{dqn_forward.1} parent=1 // pred_fallthru
      _
    // Predicated region
    $region10: #{dqn_forward.1} parent=1 // pred_check
      _
    $region11: #{dqn_forward.1} parent=1 // pred_check_branch
      %34 = sbr.rel (0) target = $region13
    $region12: #{dqn_forward.1} parent=1 // pred_region
      %s36 = ssub.s32 256, 256
      %37 = vsyncadd [#allocation6], %s36
      %s39 = sshll.u32 [#allocation7], 4
      %s40 = int_to_ptr.vmem [resolvable:$true] %s39
      %42 = dma.hbm_to_vmem [thread:$0]  %s2, 256, %s40, [#allocation6]
    $region13: #{dqn_forward.1} parent=1 // pred_fallthru
      _
    // Predicated region
    $region14: #{dqn_forward.1} parent=1 // pred_check
      _
    $region15: #{dqn_forward.1} parent=1 // pred_check_branch
      %44 = sbr.rel (0) target = $region17
    $region16: #{dqn_forward.1} parent=1 // pred_region
      %45 = dma.done [#allocation3], 128
    $region17: #{dqn_forward.1} parent=1 // pred_fallthru
      _
    // Predicated region
    $region18: #{dqn_forward.1} parent=1 // pred_check
      _
    $region19: #{dqn_forward.1} parent=1 // pred_check_branch
      %47 = sbr.rel (0) target = $region21
    $region20: #{dqn_forward.1} parent=1 // pred_region
      %48 = dma.done [#allocation6], 8448
    $region21: #{dqn_forward.1} parent=1 // pred_fallthru
      _
    // Predicated region
    $region22: #{dqn_forward.1} parent=1 // pred_check
      _
    $region23: #{dqn_forward.1} parent=1 // pred_check_branch
      %50 = sbr.rel (0) target = $region25
    $region24: #{dqn_forward.1} parent=1 // pred_region
      %51 = dma.done [#allocation6], 256
    $region25: #{dqn_forward.1} parent=1 // pred_fallthru
      _
    %v53 = vld [vmem:[#allocation2] sm:$0xff]
    %v54 = vpack.c.bf16 %v53, %v53
    %v55 = vld [vmem:[#allocation5] sm:$0xff]
    %v56 = vld [vmem:[#allocation5 + $0x8] sm:$0xff]
    %v57 = vld [vmem:[#allocation5 + $0x10] sm:$0xff]
    %v58 = vld [vmem:[#allocation5 + $0x18] sm:$0xff]
    %v59 = vld [vmem:[#allocation5 + $0x20] sm:$0xff]
    %v60 = vld [vmem:[#allocation5 + $0x28] sm:$0xff]
    %v61 = vld [vmem:[#allocation5 + $0x30] sm:$0xff]
    %v62 = vld [vmem:[#allocation5 + $0x38] sm:$0xff]
    %v63 = vld [vmem:[#allocation5 + $0x40] sm:$0xff]
    %v64 = vld [vmem:[#allocation5 + $0x48] sm:$0xff]
    %v65 = vld [vmem:[#allocation5 + $0x50] sm:$0xff]
    %v66 = vld [vmem:[#allocation5 + $0x58] sm:$0xff]
    %v67 = vld [vmem:[#allocation5 + $0x60] sm:$0xff]
    %v68 = vld [vmem:[#allocation5 + $0x68] sm:$0xff]
    %v69 = vld [vmem:[#allocation5 + $0x70] sm:$0xff]
    %v70 = vld [vmem:[#allocation5 + $0x78] sm:$0xff]
    %v71 = vld [vmem:[#allocation5 + $0x80] sm:$0xff]
    %v72 = vld [vmem:[#allocation5 + $0x88] sm:$0xff]
    %v73 = vld [vmem:[#allocation5 + $0x90] sm:$0xff]
    %v74 = vld [vmem:[#allocation5 + $0x98] sm:$0xff]
    %v75 = vld [vmem:[#allocation5 + $0xa0] sm:$0xff]
    %v76 = vld [vmem:[#allocation5 + $0xa8] sm:$0xff]
    %v77 = vld [vmem:[#allocation5 + $0xb0] sm:$0xff]
    %v78 = vld [vmem:[#allocation5 + $0xb8] sm:$0xff]
    %v79 = vld [vmem:[#allocation5 + $0xc0] sm:$0xff]
    %v80 = vld [vmem:[#allocation5 + $0xc8] sm:$0xff]
    %v81 = vld [vmem:[#allocation5 + $0xd0] sm:$0xff]
    %v82 = vld [vmem:[#allocation5 + $0xd8] sm:$0xff]
    %v83 = vld [vmem:[#allocation5 + $0xe0] sm:$0xff]
    %v84 = vld [vmem:[#allocation5 + $0xe8] sm:$0xff]
    %v85 = vld [vmem:[#allocation5 + $0xf0] sm:$0xff]
    %v86 = vld [vmem:[#allocation5 + $0xf8] sm:$0xff]
    %v87 = vld [vmem:[#allocation5 + $0x100] sm:$0xff]
    %v88 = vld [vmem:[#allocation5 + $0x108] sm:$0xff]
    %v89 = vld [vmem:[#allocation5 + $0x110] sm:$0xf]
    %v90 = vld [vmem:[#allocation5 + $0x118] sm:$0xf]
    %v91 = vld [vmem:[#allocation5 + $0x120] sm:$0xf]
    %v92 = vld [vmem:[#allocation5 + $0x128] sm:$0xf]
    %v93 = vld [vmem:[#allocation5 + $0x130] sm:$0xf]
    %v94 = vld [vmem:[#allocation5 + $0x138] sm:$0xf]
    %v95 = vld [vmem:[#allocation5 + $0x140] sm:$0xf]
    %v96 = vld [vmem:[#allocation5 + $0x148] sm:$0xf]
    %v97 = vld [vmem:[#allocation5 + $0x150] sm:$0xf]
    %v98 = vld [vmem:[#allocation5 + $0x158] sm:$0xf]
    %v99 = vld [vmem:[#allocation5 + $0x160] sm:$0xf]
    %v100 = vld [vmem:[#allocation5 + $0x168] sm:$0xf]
    %v101 = vld [vmem:[#allocation5 + $0x170] sm:$0xf]
    %v102 = vld [vmem:[#allocation5 + $0x178] sm:$0xf]
    %v103 = vld [vmem:[#allocation5 + $0x180] sm:$0xf]
    %v104 = vld [vmem:[#allocation5 + $0x188] sm:$0xf]
    %v105 = vld [vmem:[#allocation5 + $0x190] sm:$0xf]
    %v106 = vld [vmem:[#allocation5 + $0x198] sm:$0xf]
    %v107 = vld [vmem:[#allocation5 + $0x1a0] sm:$0xf]
    %v108 = vld [vmem:[#allocation5 + $0x1a8] sm:$0xf]
    %v109 = vld [vmem:[#allocation5 + $0x1b0] sm:$0xf]
    %v110 = vld [vmem:[#allocation5 + $0x1b8] sm:$0xf]
    %v111 = vld [vmem:[#allocation5 + $0x1c0] sm:$0xf]
    %v112 = vld [vmem:[#allocation5 + $0x1c8] sm:$0xf]
    %v113 = vld [vmem:[#allocation5 + $0x1d0] sm:$0xf]
    %v114 = vld [vmem:[#allocation5 + $0x1d8] sm:$0xf]
    %v115 = vld [vmem:[#allocation5 + $0x1e0] sm:$0xf]
    %v116 = vld [vmem:[#allocation5 + $0x1e8] sm:$0xf]
    %v117 = vld [vmem:[#allocation5 + $0x1f0] sm:$0xf]
    %v118 = vld [vmem:[#allocation5 + $0x1f8] sm:$0xf]
    %v119 = vld [vmem:[#allocation5 + $0x200] sm:$0xf]
    %v120 = vld [vmem:[#allocation5 + $0x208] sm:$0xf]
    %v121 = vld [vmem:[#allocation7] ss:$8 sm:$0x3]
    %s122 = scalar_lea.vmem [#allocation7], 1
    %v123 = vld [vmem:[%s122] ss:$8 sm:$0x3]
    %v124 = vld [vmem:[#allocation7 + $0x2] ss:$0 sm:$0xff]
    %v126 = vlaneseq
    %v127 = vshrl.u32 %v126, 7
    %v128 = vsub.s32 0, %v127
    %v129 = vrot.slane %v121, %v128
    %v130 = vlaneseq
    %v131 = vshrl.u32 %v130, 7
    %v132 = vsub.s32 1, %v131
    %v133 = vrot.slane %v121, %v132
    %v138 = vunpack.c.l.b16 %v55
    %v139 = vunpack.c.h.b16 %v55
    %v140 = vunpack.c.l.b16 %v56
    %v141 = vunpack.c.h.b16 %v56
    %v142 = vpack.c.b16 %v140, %v138
    %v143 = vpack.c.b16 %v141, %v139
    %vm146 = vcmask 130048
    %v148 = vsel %vm146, %v54, 0
    %150 = vmatprep.subr.bf16.mxu0 %v143
    %151 = vmatpush1.bf16.msra.mxu0 %v142
    %152 = vmatprep.subr.bf16.mxu0 0
    %153 = vmatpush1.bf16.msra.mxu0 0
    %154 = vmatprep.subr.bf16.mxu0 0
    %155 = vmatpush1.bf16.msra.mxu0 0
    %156 = vmatprep.subr.bf16.mxu0 0
    %157 = vmatpush1.bf16.msra.mxu0 0
    %158 = vmatprep.subr.bf16.mxu0 0
    %159 = vmatpush1.bf16.msra.mxu0 0
    %160 = vmatprep.subr.bf16.mxu0 0
    %161 = vmatpush1.bf16.msra.mxu0 0
    %162 = vmatprep.subr.bf16.mxu0 0
    %163 = vmatpush1.bf16.msra.mxu0 0
    %164 = vmatprep.subr.bf16.mxu0 0
    %165 = vmatpush1.bf16.msra.mxu0 0
    %166 = vmatprep.subr.bf16.mxu0 0
    %167 = vmatpush1.bf16.msra.mxu0 0
    %168 = vmatprep.subr.bf16.mxu0 0
    %169 = vmatpush1.bf16.msra.mxu0 0
    %170 = vmatprep.subr.bf16.mxu0 0
    %171 = vmatpush1.bf16.msra.mxu0 0
    %172 = vmatprep.subr.bf16.mxu0 0
    %173 = vmatpush1.bf16.msra.mxu0 0
    %174 = vmatprep.subr.bf16.mxu0 0
    %175 = vmatpush1.bf16.msra.mxu0 0
    %176 = vmatprep.subr.bf16.mxu0 0
    %177 = vmatpush1.bf16.msra.mxu0 0
    %178 = vmatprep.subr.bf16.mxu0 0
    %179 = vmatpush1.bf16.msra.mxu0 0
    %180 = vmatprep.subr.bf16.mxu0 0
    %181 = vmatpush1.bf16.msra.mxu0 0
    %182 = vmatprep.mubr.bf16.mxu0 0
    %183 = vmatmul.mubr.bf16.gmra.mrb[0].mxu0 %v148
    %v184 = vpop.f32.mrb[0].mxu0
    %v185 = vadd.f32 %v129, %v184
    %v186 = vpop.f32.mrb[0].mxu0
    %v187 = vadd.f32 %v133, %v186
    %v188 = vpop.f32.mrb[0].mxu0
    %v189 = vpop.f32.mrb[0].mxu0
    %190 = vdwg.mxu0
    %v191 = vmax.f32 %v185, 0.0
    %v192 = vmax.f32 %v187, 0.0
    %v193 = vpack.c.bf16 %v191, %v191
    %v194 = vpack.c.bf16 %v192, %v192
    %v196 = vlaneseq
    %v197 = vshrl.u32 %v196, 7
    %v198 = vsub.s32 0, %v197
    %v199 = vrot.slane %v123, %v198
    %v200 = vlaneseq
    %v201 = vshrl.u32 %v200, 7
    %v202 = vsub.s32 1, %v201
    %v203 = vrot.slane %v123, %v202
    %v238 = vunpack.c.l.b16 %v57
    %v239 = vunpack.c.h.b16 %v57
    %v240 = vunpack.c.l.b16 %v58
    %v241 = vunpack.c.h.b16 %v58
    %v242 = vunpack.c.l.b16 %v59
    %v243 = vunpack.c.h.b16 %v59
    %v244 = vunpack.c.l.b16 %v60
    %v245 = vunpack.c.h.b16 %v60
    %v246 = vunpack.c.l.b16 %v61
    %v247 = vunpack.c.h.b16 %v61
    %v248 = vunpack.c.l.b16 %v62
    %v249 = vunpack.c.h.b16 %v62
    %v250 = vunpack.c.l.b16 %v63
    %v251 = vunpack.c.h.b16 %v63
    %v252 = vunpack.c.l.b16 %v64
    %v253 = vunpack.c.h.b16 %v64
    %v254 = vunpack.c.l.b16 %v65
    %v255 = vunpack.c.h.b16 %v65
    %v256 = vunpack.c.l.b16 %v66
    %v257 = vunpack.c.h.b16 %v66
    %v258 = vunpack.c.l.b16 %v67
    %v259 = vunpack.c.h.b16 %v67
    %v260 = vunpack.c.l.b16 %v68
    %v261 = vunpack.c.h.b16 %v68
    %v262 = vunpack.c.l.b16 %v69
    %v263 = vunpack.c.h.b16 %v69
    %v264 = vunpack.c.l.b16 %v70
    %v265 = vunpack.c.h.b16 %v70
    %v266 = vunpack.c.l.b16 %v71
    %v267 = vunpack.c.h.b16 %v71
    %v268 = vunpack.c.l.b16 %v72
    %v269 = vunpack.c.h.b16 %v72
    %v270 = vunpack.c.l.b16 %v73
    %v271 = vunpack.c.h.b16 %v73
    %v272 = vunpack.c.l.b16 %v74
    %v273 = vunpack.c.h.b16 %v74
    %v274 = vunpack.c.l.b16 %v75
    %v275 = vunpack.c.h.b16 %v75
    %v276 = vunpack.c.l.b16 %v76
    %v277 = vunpack.c.h.b16 %v76
    %v278 = vunpack.c.l.b16 %v77
    %v279 = vunpack.c.h.b16 %v77
    %v280 = vunpack.c.l.b16 %v78
    %v281 = vunpack.c.h.b16 %v78
    %v282 = vunpack.c.l.b16 %v79
    %v283 = vunpack.c.h.b16 %v79
    %v284 = vunpack.c.l.b16 %v80
    %v285 = vunpack.c.h.b16 %v80
    %v286 = vunpack.c.l.b16 %v81
    %v287 = vunpack.c.h.b16 %v81
    %v288 = vunpack.c.l.b16 %v82
    %v289 = vunpack.c.h.b16 %v82
    %v290 = vunpack.c.l.b16 %v83
    %v291 = vunpack.c.h.b16 %v83
    %v292 = vunpack.c.l.b16 %v84
    %v293 = vunpack.c.h.b16 %v84
    %v294 = vunpack.c.l.b16 %v85
    %v295 = vunpack.c.h.b16 %v85
    %v296 = vunpack.c.l.b16 %v86
    %v297 = vunpack.c.h.b16 %v86
    %v298 = vunpack.c.l.b16 %v87
    %v299 = vunpack.c.h.b16 %v87
    %v300 = vunpack.c.l.b16 %v88
    %v301 = vunpack.c.h.b16 %v88
    %v302 = vpack.c.b16 %v240, %v238
    %v303 = vpack.c.b16 %v241, %v239
    %v304 = vpack.c.b16 %v244, %v242
    %v305 = vpack.c.b16 %v245, %v243
    %v306 = vpack.c.b16 %v248, %v246
    %v307 = vpack.c.b16 %v249, %v247
    %v308 = vpack.c.b16 %v252, %v250
    %v309 = vpack.c.b16 %v253, %v251
    %v310 = vpack.c.b16 %v256, %v254
    %v311 = vpack.c.b16 %v257, %v255
    %v312 = vpack.c.b16 %v260, %v258
    %v313 = vpack.c.b16 %v261, %v259
    %v314 = vpack.c.b16 %v264, %v262
    %v315 = vpack.c.b16 %v265, %v263
    %v316 = vpack.c.b16 %v268, %v266
    %v317 = vpack.c.b16 %v269, %v267
    %v318 = vpack.c.b16 %v272, %v270
    %v319 = vpack.c.b16 %v273, %v271
    %v320 = vpack.c.b16 %v276, %v274
    %v321 = vpack.c.b16 %v277, %v275
    %v322 = vpack.c.b16 %v280, %v278
    %v323 = vpack.c.b16 %v281, %v279
    %v324 = vpack.c.b16 %v284, %v282
    %v325 = vpack.c.b16 %v285, %v283
    %v326 = vpack.c.b16 %v288, %v286
    %v327 = vpack.c.b16 %v289, %v287
    %v328 = vpack.c.b16 %v292, %v290
    %v329 = vpack.c.b16 %v293, %v291
    %v330 = vpack.c.b16 %v296, %v294
    %v331 = vpack.c.b16 %v297, %v295
    %v332 = vpack.c.b16 %v300, %v298
    %v333 = vpack.c.b16 %v301, %v299
    %366 = vmatprep.subr.bf16.mxu0 %v303
    %367 = vmatpush1.bf16.msra.mxu0 %v302
    %368 = vmatprep.subr.bf16.mxu0 %v305
    %369 = vmatpush1.bf16.msra.mxu0 %v304
    %370 = vmatprep.subr.bf16.mxu0 %v307
    %371 = vmatpush1.bf16.msra.mxu0 %v306
    %372 = vmatprep.subr.bf16.mxu0 %v309
    %373 = vmatpush1.bf16.msra.mxu0 %v308
    %374 = vmatprep.subr.bf16.mxu0 %v311
    %375 = vmatpush1.bf16.msra.mxu0 %v310
    %376 = vmatprep.subr.bf16.mxu0 %v313
    %377 = vmatpush1.bf16.msra.mxu0 %v312
    %378 = vmatprep.subr.bf16.mxu0 %v315
    %379 = vmatpush1.bf16.msra.mxu0 %v314
    %380 = vmatprep.subr.bf16.mxu0 %v317
    %381 = vmatpush1.bf16.msra.mxu0 %v316
    %382 = vmatprep.subr.bf16.mxu0 %v319
    %383 = vmatpush1.bf16.msra.mxu0 %v318
    %384 = vmatprep.subr.bf16.mxu0 %v321
    %385 = vmatpush1.bf16.msra.mxu0 %v320
    %386 = vmatprep.subr.bf16.mxu0 %v323
    %387 = vmatpush1.bf16.msra.mxu0 %v322
    %388 = vmatprep.subr.bf16.mxu0 %v325
    %389 = vmatpush1.bf16.msra.mxu0 %v324
    %390 = vmatprep.subr.bf16.mxu0 %v327
    %391 = vmatpush1.bf16.msra.mxu0 %v326
    %392 = vmatprep.subr.bf16.mxu0 %v329
    %393 = vmatpush1.bf16.msra.mxu0 %v328
    %394 = vmatprep.subr.bf16.mxu0 %v331
    %395 = vmatpush1.bf16.msra.mxu0 %v330
    %396 = vmatprep.subr.bf16.mxu0 %v333
    %397 = vmatpush1.bf16.msra.mxu0 %v332
    %398 = vmatprep.mubr.bf16.mxu0 %v194
    %399 = vmatmul.mubr.bf16.gmra.mrb[0].mxu0 %v193
    %v400 = vpop.f32.mrb[0].mxu0
    %v401 = vadd.f32 %v199, %v400
    %v402 = vpop.f32.mrb[0].mxu0
    %v403 = vadd.f32 %v203, %v402
    %v404 = vpop.f32.mrb[0].mxu0
    %v405 = vpop.f32.mrb[0].mxu0
    %406 = vdwg.mxu0
    %v407 = vmax.f32 %v401, 0.0
    %v408 = vmax.f32 %v403, 0.0
    %v409 = vpack.c.bf16 %v407, %v407
    %v410 = vpack.c.bf16 %v408, %v408
    %v443 = vunpack.c.l.b16 %v89
    %v444 = vunpack.c.l.b16 %v90
    %v445 = vunpack.c.l.b16 %v91
    %v446 = vunpack.c.l.b16 %v92
    %v447 = vunpack.c.l.b16 %v93
    %v448 = vunpack.c.l.b16 %v94
    %v449 = vunpack.c.l.b16 %v95
    %v450 = vunpack.c.l.b16 %v96
    %v451 = vunpack.c.l.b16 %v97
    %v452 = vunpack.c.l.b16 %v98
    %v453 = vunpack.c.l.b16 %v99
    %v454 = vunpack.c.l.b16 %v100
    %v455 = vunpack.c.l.b16 %v101
    %v456 = vunpack.c.l.b16 %v102
    %v457 = vunpack.c.l.b16 %v103
    %v458 = vunpack.c.l.b16 %v104
    %v459 = vunpack.c.l.b16 %v105
    %v460 = vunpack.c.l.b16 %v106
    %v461 = vunpack.c.l.b16 %v107
    %v462 = vunpack.c.l.b16 %v108
    %v463 = vunpack.c.l.b16 %v109
    %v464 = vunpack.c.l.b16 %v110
    %v465 = vunpack.c.l.b16 %v111
    %v466 = vunpack.c.l.b16 %v112
    %v467 = vunpack.c.l.b16 %v113
    %v468 = vunpack.c.l.b16 %v114
    %v469 = vunpack.c.l.b16 %v115
    %v470 = vunpack.c.l.b16 %v116
    %v471 = vunpack.c.l.b16 %v117
    %v472 = vunpack.c.l.b16 %v118
    %v473 = vunpack.c.l.b16 %v119
    %v474 = vunpack.c.l.b16 %v120
    %v475 = vpack.c.b16 %v444, %v443
    %v476 = vpack.c.b16 %v446, %v445
    %v477 = vpack.c.b16 %v448, %v447
    %v478 = vpack.c.b16 %v450, %v449
    %v479 = vpack.c.b16 %v452, %v451
    %v480 = vpack.c.b16 %v454, %v453
    %v481 = vpack.c.b16 %v456, %v455
    %v482 = vpack.c.b16 %v458, %v457
    %v483 = vpack.c.b16 %v460, %v459
    %v484 = vpack.c.b16 %v462, %v461
    %v485 = vpack.c.b16 %v464, %v463
    %v486 = vpack.c.b16 %v466, %v465
    %v487 = vpack.c.b16 %v468, %v467
    %v488 = vpack.c.b16 %v470, %v469
    %v489 = vpack.c.b16 %v472, %v471
    %v490 = vpack.c.b16 %v474, %v473
    %507 = vmatprep.subr.bf16.mxu0 0
    %508 = vmatpush1.bf16.msra.mxu0 %v475
    %509 = vmatprep.subr.bf16.mxu0 0
    %510 = vmatpush1.bf16.msra.mxu0 %v476
    %511 = vmatprep.subr.bf16.mxu0 0
    %512 = vmatpush1.bf16.msra.mxu0 %v477
    %513 = vmatprep.subr.bf16.mxu0 0
    %514 = vmatpush1.bf16.msra.mxu0 %v478
    %515 = vmatprep.subr.bf16.mxu0 0
    %516 = vmatpush1.bf16.msra.mxu0 %v479
    %517 = vmatprep.subr.bf16.mxu0 0
    %518 = vmatpush1.bf16.msra.mxu0 %v480
    %519 = vmatprep.subr.bf16.mxu0 0
    %520 = vmatpush1.bf16.msra.mxu0 %v481
    %521 = vmatprep.subr.bf16.mxu0 0
    %522 = vmatpush1.bf16.msra.mxu0 %v482
    %523 = vmatprep.subr.bf16.mxu0 0
    %524 = vmatpush1.bf16.msra.mxu0 %v483
    %525 = vmatprep.subr.bf16.mxu0 0
    %526 = vmatpush1.bf16.msra.mxu0 %v484
    %527 = vmatprep.subr.bf16.mxu0 0
    %528 = vmatpush1.bf16.msra.mxu0 %v485
    %529 = vmatprep.subr.bf16.mxu0 0
    %530 = vmatpush1.bf16.msra.mxu0 %v486
    %531 = vmatprep.subr.bf16.mxu0 0
    %532 = vmatpush1.bf16.msra.mxu0 %v487
    %533 = vmatprep.subr.bf16.mxu0 0
    %534 = vmatpush1.bf16.msra.mxu0 %v488
    %535 = vmatprep.subr.bf16.mxu0 0
    %536 = vmatpush1.bf16.msra.mxu0 %v489
    %537 = vmatprep.subr.bf16.mxu0 0
    %538 = vmatpush1.bf16.msra.mxu0 %v490
    %539 = vmatprep.mubr.bf16.mxu0 %v410
    %540 = vmatmul.mubr.bf16.gmra.mrb[0].mxu0 %v409
    %v541 = vpop.f32.mrb[0].mxu0
    %v542 = vadd.f32 %v124, %v541
    %v543 = vpop.f32.mrb[0].mxu0
    %v544 = vpop.f32.mrb[0].mxu0
    %v545 = vpop.f32.mrb[0].mxu0
    %546 = vdwg.mxu0
    %547 = vst [vmem:[#allocation8] sm:$0xff] %v542
    // Predicated region
    $region26: #{dqn_forward.1} parent=1 // pred_check
      _
    $region27: #{dqn_forward.1} parent=1 // pred_check_branch
      %549 = sbr.rel (0) target = $region29
    $region28: #{dqn_forward.1} parent=1 // pred_region
      %s551 = ssub.s32 128, 128
      %552 = vsyncadd [#allocation4], %s551
      %s554 = sshll.u32 [#allocation8], 4
      %s555 = int_to_ptr.vmem [resolvable:$true] %s554
      %557 = dma.vmem_to_hbm [thread:$0]  %s555, 128, %s3, [#allocation4]
    $region29: #{dqn_forward.1} parent=1 // pred_fallthru
      _
    // Predicated region
    $region30: #{dqn_forward.1} parent=1 // pred_check
      _
    $region31: #{dqn_forward.1} parent=1 // pred_check_branch
      %559 = sbr.rel (0) target = $region33
    $region32: #{dqn_forward.1} parent=1 // pred_region
      %560 = dma.done [#allocation4], 128
    $region33: #{dqn_forward.1} parent=1 // pred_fallthru
      _
    %561 = vsyncpa [#allocation3], 1
    %562 = vsyncpa [#allocation6], 1
    %563 = vsyncpa [#allocation4], 1

</llo_original>
